<compile_context>
chip_gen: v7x
topology: tpu7x:2x2x1
jax: 0.10.0
libtpu: 0.0.40
codegen_flags: <defaults>
</compile_context>

<pallas_src>
import math
import numpy as np

import jax
import jax.numpy as jnp
from jax.experimental import pallas as pl
from jax.experimental.pallas import tpu as pltpu


# ---------------------------------------------------------------------------
# Host-side (compile-time) constants: spherical Bessel zeros & normalizers.
# ---------------------------------------------------------------------------
def _spherical_jn(l, x):
    """Spherical Bessel j_l(x), upward recurrence (fine for small l, x > 0)."""
    x = np.asarray(x, dtype=np.float64)
    j0 = np.sin(x) / x
    if l == 0:
        return j0
    j1 = np.sin(x) / (x * x) - np.cos(x) / x
    if l == 1:
        return j1
    jm1, jc = j0, j1
    for ll in range(1, l):
        jn = (2 * ll + 1) / x * jc - jm1
        jm1, jc = jc, jn
    return jc


def _bisect(f, a, b, iters=200):
    fa = f(a)
    for _ in range(iters):
        m = 0.5 * (a + b)
        fm = f(m)
        if fa * fm <= 0.0:
            b = m
        else:
            a, fa = m, fm
    return 0.5 * (a + b)


def _bessel_zeros(n, k):
    """k-th zeros of j_0..j_{n-1}, same algorithm as dimenet_utils.Jn_zeros."""
    zerosj = np.zeros((n, k), dtype=np.float64)
    zerosj[0] = np.arange(1, k + 1) * np.pi
    points = np.arange(1, k + n) * np.pi
    racines = np.zeros(k + n - 1, dtype=np.float64)
    for i in range(1, n):
        for j in range(k + n - 1 - i):
            racines[j] = _bisect(lambda x: _spherical_jn(i, x),
                                 points[j], points[j + 1])
        points = racines.copy()
        zerosj[i][:k] = racines[:k]
    return zerosj


def _bessel_constants(num_spherical, num_radial):
    zeros = _bessel_zeros(num_spherical, num_radial)          # (n, k)
    norms = np.zeros_like(zeros)
    for l in range(num_spherical):
        for i in range(num_radial):
            # 1 / sqrt(0.5 * j_{l+1}(z)^2) == sqrt(2) / |j_{l+1}(z)|
            norms[l, i] = math.sqrt(2.0) / abs(_spherical_jn(l + 1, zeros[l, i]))
    return zeros, norms


def _make_const_table(num_spherical, num_radial):
    """(NK, 2 + NS) table: [ z_{l,n} | 1/z_{l,n} | C_0 | ... | C_{NS-1} ].

    C_l[c] = sqrt((2l+1)/4pi) * norm_{l,n} if column c belongs to degree l,
    else 0 (the degree mask is baked into the coefficient)."""
    NK = num_spherical * num_radial
    zeros, norms = _bessel_constants(num_spherical, num_radial)
    freq = zeros.reshape(NK)
    col_l = np.repeat(np.arange(num_spherical), num_radial)
    tab = np.zeros((NK, 2 + num_spherical), dtype=np.float32)
    tab[:, 0] = freq
    tab[:, 1] = 1.0 / freq
    for l in range(num_spherical):
        y_l = math.sqrt((2 * l + 1) / (4.0 * math.pi))
        tab[:, 2 + l] = np.where(col_l == l, y_l * norms.reshape(NK), 0.0)
    return tab


# ---------------------------------------------------------------------------
# Pallas kernel
# ---------------------------------------------------------------------------
def make_sbl_kernel(num_spherical, num_radial, cutoff, envelope_exponent):
    NS = num_spherical
    p = envelope_exponent + 1
    a = -(p + 1) * (p + 2) / 2.0
    b = float(p * (p + 2))
    c = -p * (p + 1) / 2.0
    inv_cutoff = 1.0 / cutoff

    def kernel(in_ref, const_ref, out_ref):
        # in_ref   : (2, TT)      row 0 = dist[idx_kj], row 1 = angle
        # const_ref: (NK, 2+NS)   col 0 = z_{l,n}, col 1 = 1/z_{l,n},
        #                         col 2+l = masked sqrt((2l+1)/4pi)*norm_{l,n}
        # out_ref  : (NK, TT)     lane axis = triplets (lane-dense)
        x = in_ref[0:1, :] * inv_cutoff                      # (1, TT)
        theta = in_ref[1:2, :]                               # (1, TT)
        # Guard against dist == 0 so masked-off Bessel garbage stays finite
        # (0 * inf would otherwise turn into NaN inside the masked sum).
        x = jnp.maximum(x, 1e-12)

        # Exact reciprocal over the (1, TT) row only (cheap).  NOTE: an
        # approx=True vrcp (~1e-4 rel) gets amplified by the cancellations in
        # the upward Bessel recurrence at small z and would exceed the 2e-3
        # reference tolerance, so full precision is used here on purpose.
        inv_x = 1.0 / x                                      # (1, TT)

        # Envelope(x) = 1/x + a x^(p-1) + b x^p + c x^(p+1)
        xp0 = x
        for _ in range(p - 2):
            xp0 = xp0 * x                                    # x^(p-1)
        xp1 = xp0 * x                                        # x^p
        xp2 = xp1 * x                                        # x^(p+1)
        env = inv_x + a * xp0 + b * xp1 + c * xp2            # (1, TT)

        freq = const_ref[:, 0:1]                             # (NK, 1)
        inv_freq = const_ref[:, 1:2]                         # (NK, 1)

        # Spherical Bessel radial basis at z = zeros[l,n] * x (all columns).
        z = freq * x                                         # (NK, TT)
        inv_z = inv_freq * inv_x                             # no (NK,TT) divide
        sin_z = jnp.sin(z)
        cos_z = jnp.cos(z)

        j = [sin_z * inv_z]                                  # j0
        if NS > 1:
            j.append((sin_z * inv_z - cos_z) * inv_z)        # j1
        for l in range(2, NS):
            j.append((2 * l - 1) * inv_z * j[l - 1] - j[l - 2])

        # Real spherical harmonics Y_l^0(theta) via the Legendre recurrence
        # (the sqrt((2l+1)/4pi) coefficient is folded into the const table).
        ct = jnp.cos(theta)                                  # (1, TT)
        P = [1.0]
        if NS > 1:
            P.append(ct)
        for l in range(2, NS):
            P.append(((2 * l - 1) * ct * P[l - 1]
                      - (l - 1) * P[l - 2]) * (1.0 / l))

        # out[c, t] = env[t] * sum_l j_l(z[c,t]) * C_l[c] * P_l(cos theta[t])
        acc = j[0] * const_ref[:, 2:3]                       # P_0 == 1
        for l in range(1, NS):
            acc = acc + j[l] * (const_ref[:, 2 + l:3 + l] * P[l])

        out_ref[...] = (env * acc).astype(out_ref.dtype)

    return kernel


def spherical_basis_forward(dist, angle, idx_kj, *,
                            num_spherical=4, num_radial=4,
                            cutoff=5.0, envelope_exponent=5, tile=2048):
    """Pallas implementation of SphericalBasisLayer.forward -> (T, NK)."""
    T = int(angle.shape[0])
    NK = num_spherical * num_radial

    # rbf is elementwise in dist, so rbf[idx_kj] == rbf(dist[idx_kj]):
    # gather the per-triplet scalar distances as JAX glue.
    dist_kj = jnp.take(dist, idx_kj).astype(jnp.float32)
    angle_f = angle.astype(jnp.float32)

    # Lane-dense tiling: triplets on the 128-wide lane axis.  Keep the grid
    # >= 2 steps when there is enough work so both v7x TensorCores are used.
    tile = max(128, (tile // 128) * 128)
    if T > 128:
        tile = min(tile, 128 * pl.cdiv(T, 256))
    n_blk = pl.cdiv(T, tile)
    T_pad = n_blk * tile
    if T_pad != T:
        pad = T_pad - T
        dist_kj = jnp.concatenate(
            [dist_kj, jnp.full((pad,), cutoff, jnp.float32)])
        angle_f = jnp.concatenate([angle_f, jnp.zeros((pad,), jnp.float32)])

    inp = jnp.stack([dist_kj, angle_f], axis=0)              # (2, T_pad)
    consts = jnp.asarray(_make_const_table(num_spherical, num_radial))

    kernel = make_sbl_kernel(num_spherical, num_radial, cutoff,
                             envelope_exponent)

    cost = pl.CostEstimate(
        flops=int((14 + 6 * num_spherical) * NK * T_pad),
        transcendentals=int((2 * NK + 2) * T_pad),
        bytes_accessed=int(4 * (NK * T_pad + 2 * T_pad + consts.size)),
    )

    out_t = pl.pallas_call(
        kernel,
        out_shape=jax.ShapeDtypeStruct((NK, T_pad), jnp.float32),
        grid_spec=pltpu.PrefetchScalarGridSpec(
            num_scalar_prefetch=0,
            grid=(n_blk,),
            in_specs=[
                pl.BlockSpec((2, tile), lambda i: (0, i)),
                pl.BlockSpec((NK, 2 + num_spherical), lambda i: (0, 0)),
            ],
            out_specs=pl.BlockSpec((NK, tile), lambda i: (0, i)),
        ),
        compiler_params=pltpu.CompilerParams(
            dimension_semantics=("parallel",)),
        cost_estimate=cost,
    )(inp, consts)

    # (NK, T_pad) -> (T, NK) to match the PyTorch module's output layout.
    return out_t.T[:T]


# ---------------------------------------------------------------------------
# Pure-numpy reference mirroring the PyTorch module (rbf over edges + gather).
# ---------------------------------------------------------------------------
def reference_forward(dist, angle, idx_kj, num_spherical, num_radial,
                      cutoff, envelope_exponent):
    zeros, norms = _bessel_constants(num_spherical, num_radial)
    dist = np.asarray(dist, np.float64) / cutoff
    angle = np.asarray(angle, np.float64)
    idx_kj = np.asarray(idx_kj)
    E = dist.shape[0]
    NK = num_spherical * num_radial

    rbf = np.zeros((E, NK), np.float64)
    for l in range(num_spherical):
        for i in range(num_radial):
            rbf[:, l * num_radial + i] = norms[l, i] * _spherical_jn(
                l, zeros[l, i] * dist)

    p = envelope_exponent + 1
    a = -(p + 1) * (p + 2) / 2.0
    b = float(p * (p + 2))
    c = -p * (p + 1) / 2.0
    env = 1.0 / dist + a * dist ** (p - 1) + b * dist ** p + c * dist ** (p + 1)
    rbf = env[:, None] * rbf

    ct = np.cos(angle)
    P = [np.ones_like(ct), ct]
    for l in range(2, num_spherical):
        P.append(((2 * l - 1) * ct * P[l - 1] - (l - 1) * P[l - 2]) / l)
    cbf = np.stack(
        [math.sqrt((2 * l + 1) / (4.0 * math.pi)) * P[l]
         for l in range(num_spherical)], axis=1)

    out = rbf[idx_kj].reshape(-1, num_spherical, num_radial) * cbf[:, :, None]
    return out.reshape(-1, NK)


# ---------------------------------------------------------------------------
if __name__ == "__main__":
    num_spherical, num_radial = 4, 4
    cutoff, envelope_exponent = 5.0, 5
    E, T = 32, 500                     # edges, triplets (T exercises padding)

    key = jax.random.PRNGKey(0)
    k1, k2, k3 = jax.random.split(key, 3)
    dist = jax.random.uniform(k1, (E,), jnp.float32, 0.5, cutoff)
    angle = jax.random.uniform(k2, (T,), jnp.float32, 0.0, math.pi)
    idx_kj = jax.random.randint(k3, (T,), 0, E, jnp.int32)

    out = spherical_basis_forward(
        dist, angle, idx_kj,
        num_spherical=num_spherical, num_radial=num_radial,
        cutoff=cutoff, envelope_exponent=envelope_exponent)
    out = jax.block_until_ready(out)

    ref = reference_forward(np.array(dist), np.array(angle), np.array(idx_kj),
                            num_spherical, num_radial, cutoff,
                            envelope_exponent)
    np.testing.assert_allclose(np.array(out), ref, rtol=2e-3, atol=2e-3)
    print("KERNEL_OK")
</pallas_src>

<mosaic_0001>
module attributes {stable_mosaic.version = 11 : i64} {
  func.func @kernel(%arg0: i32, %arg1: memref<2x256xf32, #tpu.memory_space<vmem>>, %arg2: memref<16x6xf32, #tpu.memory_space<vmem>>, %arg3: memref<16x256xf32, #tpu.memory_space<vmem>>) attributes {dimension_semantics = [#tpu.dimension_semantics<parallel>], iteration_bounds = array<i64: 2>, scalar_prefetch = 0 : i64, scratch_operands = 0 : i64, tpu.core_type = #tpu.core_type<tc>, window_params = [{transform_indices = @transform_0, window_bounds = array<i64: 2, 256>}, {pipeline_mode = #tpu.pipeline_mode<synchronous>, transform_indices = @transform_1, window_bounds = array<i64: 16, 6>}, {transform_indices = @transform_2, window_bounds = array<i64: 16, 256>}]} {
    %c0 = arith.constant 0 : index
    %c0_0 = arith.constant 0 : index
    %0 = vector.load %arg1[%c0, %c0_0] : memref<2x256xf32, #tpu.memory_space<vmem>>, vector<1x256xf32>
    %cst = arith.constant 2.000000e-01 : f32
    %1 = vector.broadcast %cst : f32 to vector<1x256xf32>
    %2 = arith.mulf %0, %1 : vector<1x256xf32>
    %c1 = arith.constant 1 : index
    %c0_1 = arith.constant 0 : index
    %3 = vector.load %arg1[%c1, %c0_1] : memref<2x256xf32, #tpu.memory_space<vmem>>, vector<1x256xf32>
    %cst_2 = arith.constant 9.99999996E-13 : f32
    %4 = vector.broadcast %cst_2 : f32 to vector<1x256xf32>
    %5 = arith.maximumf %2, %4 : vector<1x256xf32>
    %cst_3 = arith.constant 1.000000e+00 : f32
    %6 = vector.broadcast %cst_3 : f32 to vector<1x256xf32>
    %7 = arith.divf %6, %5 : vector<1x256xf32>
    %8 = arith.mulf %5, %5 : vector<1x256xf32>
    %9 = arith.mulf %8, %5 : vector<1x256xf32>
    %10 = arith.mulf %9, %5 : vector<1x256xf32>
    %11 = arith.mulf %10, %5 : vector<1x256xf32>
    %12 = arith.mulf %11, %5 : vector<1x256xf32>
    %13 = arith.mulf %12, %5 : vector<1x256xf32>
    %cst_4 = arith.constant -2.800000e+01 : f32
    %14 = vector.broadcast %cst_4 : f32 to vector<1x256xf32>
    %15 = arith.mulf %14, %11 : vector<1x256xf32>
    %16 = arith.addf %7, %15 : vector<1x256xf32>
    %cst_5 = arith.constant 4.800000e+01 : f32
    %17 = vector.broadcast %cst_5 : f32 to vector<1x256xf32>
    %18 = arith.mulf %17, %12 : vector<1x256xf32>
    %19 = arith.addf %16, %18 : vector<1x256xf32>
    %cst_6 = arith.constant -2.100000e+01 : f32
    %20 = vector.broadcast %cst_6 : f32 to vector<1x256xf32>
    %21 = arith.mulf %20, %13 : vector<1x256xf32>
    %22 = arith.addf %19, %21 : vector<1x256xf32>
    %c0_7 = arith.constant 0 : index
    %c0_8 = arith.constant 0 : index
    %23 = vector.load %arg2[%c0_7, %c0_8] : memref<16x6xf32, #tpu.memory_space<vmem>>, vector<16x1xf32>
    %c0_9 = arith.constant 0 : index
    %c1_10 = arith.constant 1 : index
    %24 = vector.load %arg2[%c0_9, %c1_10] : memref<16x6xf32, #tpu.memory_space<vmem>>, vector<16x1xf32>
    %25 = vector.broadcast %23 : vector<16x1xf32> to vector<16x256xf32>
    %26 = vector.broadcast %5 : vector<1x256xf32> to vector<16x256xf32>
    %27 = arith.mulf %25, %26 : vector<16x256xf32>
    %28 = vector.broadcast %24 : vector<16x1xf32> to vector<16x256xf32>
    %29 = vector.broadcast %7 : vector<1x256xf32> to vector<16x256xf32>
    %30 = arith.mulf %28, %29 : vector<16x256xf32>
    %31 = math.sin %27 : vector<16x256xf32>
    %32 = math.cos %27 : vector<16x256xf32>
    %33 = arith.mulf %31, %30 : vector<16x256xf32>
    %34 = arith.mulf %31, %30 : vector<16x256xf32>
    %35 = arith.subf %34, %32 : vector<16x256xf32>
    %36 = arith.mulf %35, %30 : vector<16x256xf32>
    %cst_11 = arith.constant 3.000000e+00 : f32
    %37 = vector.broadcast %cst_11 : f32 to vector<16x256xf32>
    %38 = arith.mulf %37, %30 : vector<16x256xf32>
    %39 = arith.mulf %38, %36 : vector<16x256xf32>
    %40 = arith.subf %39, %33 : vector<16x256xf32>
    %cst_12 = arith.constant 5.000000e+00 : f32
    %41 = vector.broadcast %cst_12 : f32 to vector<16x256xf32>
    %42 = arith.mulf %41, %30 : vector<16x256xf32>
    %43 = arith.mulf %42, %40 : vector<16x256xf32>
    %44 = arith.subf %43, %36 : vector<16x256xf32>
    %45 = math.cos %3 : vector<1x256xf32>
    %cst_13 = arith.constant 3.000000e+00 : f32
    %46 = vector.broadcast %cst_13 : f32 to vector<1x256xf32>
    %47 = arith.mulf %46, %45 : vector<1x256xf32>
    %48 = arith.mulf %47, %45 : vector<1x256xf32>
    %cst_14 = arith.constant 1.000000e+00 : f32
    %49 = vector.broadcast %cst_14 : f32 to vector<1x256xf32>
    %50 = arith.subf %48, %49 : vector<1x256xf32>
    %cst_15 = arith.constant 5.000000e-01 : f32
    %51 = vector.broadcast %cst_15 : f32 to vector<1x256xf32>
    %52 = arith.mulf %50, %51 : vector<1x256xf32>
    %cst_16 = arith.constant 5.000000e+00 : f32
    %53 = vector.broadcast %cst_16 : f32 to vector<1x256xf32>
    %54 = arith.mulf %53, %45 : vector<1x256xf32>
    %55 = arith.mulf %54, %52 : vector<1x256xf32>
    %cst_17 = arith.constant 2.000000e+00 : f32
    %56 = vector.broadcast %cst_17 : f32 to vector<1x256xf32>
    %57 = arith.mulf %56, %45 : vector<1x256xf32>
    %58 = arith.subf %55, %57 : vector<1x256xf32>
    %cst_18 = arith.constant 0.333333343 : f32
    %59 = vector.broadcast %cst_18 : f32 to vector<1x256xf32>
    %60 = arith.mulf %58, %59 : vector<1x256xf32>
    %c0_19 = arith.constant 0 : index
    %c2 = arith.constant 2 : index
    %61 = vector.load %arg2[%c0_19, %c2] : memref<16x6xf32, #tpu.memory_space<vmem>>, vector<16x1xf32>
    %62 = vector.broadcast %61 : vector<16x1xf32> to vector<16x256xf32>
    %63 = arith.mulf %33, %62 : vector<16x256xf32>
    %c0_20 = arith.constant 0 : index
    %c3 = arith.constant 3 : index
    %64 = vector.load %arg2[%c0_20, %c3] : memref<16x6xf32, #tpu.memory_space<vmem>>, vector<16x1xf32>
    %65 = vector.broadcast %64 : vector<16x1xf32> to vector<16x256xf32>
    %66 = vector.broadcast %45 : vector<1x256xf32> to vector<16x256xf32>
    %67 = arith.mulf %65, %66 : vector<16x256xf32>
    %68 = arith.mulf %36, %67 : vector<16x256xf32>
    %69 = arith.addf %63, %68 : vector<16x256xf32>
    %c0_21 = arith.constant 0 : index
    %c4 = arith.constant 4 : index
    %70 = vector.load %arg2[%c0_21, %c4] : memref<16x6xf32, #tpu.memory_space<vmem>>, vector<16x1xf32>
    %71 = vector.broadcast %70 : vector<16x1xf32> to vector<16x256xf32>
    %72 = vector.broadcast %52 : vector<1x256xf32> to vector<16x256xf32>
    %73 = arith.mulf %71, %72 : vector<16x256xf32>
    %74 = arith.mulf %40, %73 : vector<16x256xf32>
    %75 = arith.addf %69, %74 : vector<16x256xf32>
    %c0_22 = arith.constant 0 : index
    %c5 = arith.constant 5 : index
    %76 = vector.load %arg2[%c0_22, %c5] : memref<16x6xf32, #tpu.memory_space<vmem>>, vector<16x1xf32>
    %77 = vector.broadcast %76 : vector<16x1xf32> to vector<16x256xf32>
    %78 = vector.broadcast %60 : vector<1x256xf32> to vector<16x256xf32>
    %79 = arith.mulf %77, %78 : vector<16x256xf32>
    %80 = arith.mulf %44, %79 : vector<16x256xf32>
    %81 = arith.addf %75, %80 : vector<16x256xf32>
    %82 = vector.broadcast %22 : vector<1x256xf32> to vector<16x256xf32>
    %83 = arith.mulf %82, %81 : vector<16x256xf32>
    %c0_23 = arith.constant 0 : index
    %c0_24 = arith.constant 0 : index
    %84 = vector.load %arg3[%c0_23, %c0_24] : memref<16x256xf32, #tpu.memory_space<vmem>>, vector<16x256xf32>
    tpu.vector_store %arg3[%c0_23, %c0_24], %83 {strides = array<i32>} : memref<16x256xf32, #tpu.memory_space<vmem>>, vector<16x256xf32>,
    return
  }
  func.func @transform_0(%arg0: i32) -> (i32, i32) {
    %c0_i32 = arith.constant 0 : i32
    %c0_i32_0 = arith.constant 0 : i32
    return %c0_i32, %arg0 : i32, i32
  }
  func.func @transform_1(%arg0: i32) -> (i32, i32) {
    %c0_i32 = arith.constant 0 : i32
    %c0_i32_0 = arith.constant 0 : i32
    %c0_i32_1 = arith.constant 0 : i32
    return %c0_i32, %c0_i32_0 : i32, i32
  }
  func.func @transform_2(%arg0: i32) -> (i32, i32) {
    %c0_i32 = arith.constant 0 : i32
    %c0_i32_0 = arith.constant 0 : i32
    return %c0_i32, %arg0 : i32, i32
  }
}

</mosaic_0001>

<llo_original>
// kernel: tpu_custom_call.1
$region0: #{tpu_custom_call.1}
  #allocation0 [shape = 'u32[]', space=smem, size = 0x4, offset = 0x4, fixed_abs, tag = 'smem constant byte address 0x4 - core index']
  #allocation1 [shape = 'u32[144,128]{1,0:T(1,128)}', space=vmem, size = 0x12000, scoped, tag = 'internal scratch']
  %s0 = inlined_call_operand.vmem [shape: f32[2,512], index: 0, kind: input, shape index: {}]
  %s1 = inlined_call_operand.vmem [shape: f32[16,6], index: 1, kind: input, shape index: {}]
  %s2 = inlined_call_operand.hbm [shape: f32[16,512], index: 2, kind: output, shape index: {}]
  %s3 = sld [smem:[#allocation0]]
  $region41: #{tpu_custom_call.1} parent=0
    _
  %s5 = ssub.s32 1, %s3
  %s6 = scalar_select 0, %s5, %s3
  $region1: #{tpu_custom_call.1} parent=0
    #allocation2 [shape = 'u8[32768]{0}', space=vmem, size = 0x8000, scoped, tag = 'output window, operand 0']
    #allocation3 [shape = 's32[2]{0}', space=sflag, size = 0x8, scoped, tag = 'scoped memory for tpu_custom_call.1']
    %7 = vsyncpa [#allocation3], 0
    %s8 = scalar_lea.sflag [#allocation3], 1
    %9 = vsyncpa %s8, 0
    loop: start=0, step=1, limit=4
    $region2: #{tpu_custom_call.1} parent=1 // loop_pre_header
      _
    $region3: #{tpu_custom_call.1} parent=1 // loop_header
      %s11 = sphi 0, %s15
      %p12 = scmp.ge.s32.totalorder %s11, 4
      %s21 = sphi 0, %s23
      %s24 = sphi 0, %s21
      %s25 = sphi 0, %s24
      %s41 = sphi 0, %s25
      %s45 = sphi 0, %s45
      %s47 = sphi 0, %s45
      %s48 = sphi 0, %s47
      %s62 = sphi 0, %s48
      %s68 = sphi 0, %s70
      %s71 = sphi 0, %s68
      %s72 = sphi 0, %s71
      %s88 = sphi 0, %s72
    $region4: #{tpu_custom_call.1} parent=1 // loop_header_branch
      %14 = sbr.rel (%p12) target = $region8
    $region5: #{tpu_custom_call.1} parent=1 // loop_body
      %s16 = ssub.s32 %s11, 1
      %s17 = ssub.s32 %s11, 2
      %s18 = sadd.s32 %s11, 1
      %s19 = ssub.s32 %s11, %s18
      %p20 = scmp.eq.s32.totalorder %s19, 0
      %s22 = sadd.s32 %s21, 1
      %s23 = scalar_select %p20, %s21, %s22
      %p26 = pneg %p20
      %p27 = scmp.eq.s32.totalorder %s11, 1
      %p28 = por %p26, %p27
      %p29 = scmp.ne.s32.totalorder %s21, %s24
      %p30 = scmp.eq.s32.totalorder %s11, 0
      %p31 = por %p29, %p30
      %p32 = scmp.ne.s32.totalorder %s21, %s24
      %p33 = scmp.eq.s32.totalorder %s16, 1
      %p34 = por %p32, %p33
      %p35 = scmp.ne.s32.totalorder %s24, %s25
      %p36 = scmp.eq.s32.totalorder %s16, 0
      %p37 = por %p35, %p36
      %p38 = scmp.ne.s32.totalorder %s24, %s25
      %p39 = scmp.eq.s32.totalorder %s17, 1
      %p40 = por %p38, %p39
      %p42 = scmp.ne.s32.totalorder %s25, %s41
      %p43 = scmp.eq.s32.totalorder %s17, 0
      %p44 = por %p42, %p43
      %s46 = sadd.s32 %s45, 1
      %p49 = scmp.eq.s32.totalorder %s11, 1
      %p50 = scmp.ne.s32.totalorder %s45, %s47
      %p51 = scmp.eq.s32.totalorder %s11, 0
      %p52 = por %p50, %p51
      %p53 = scmp.ne.s32.totalorder %s45, %s47
      %p54 = scmp.eq.s32.totalorder %s16, 1
      %p55 = por %p53, %p54
      %p56 = scmp.ne.s32.totalorder %s47, %s48
      %p57 = scmp.eq.s32.totalorder %s16, 0
      %p58 = por %p56, %p57
      %p59 = scmp.ne.s32.totalorder %s47, %s48
      %p60 = scmp.eq.s32.totalorder %s17, 1
      %p61 = por %p59, %p60
      %p63 = scmp.ne.s32.totalorder %s48, %s62
      %p64 = scmp.eq.s32.totalorder %s17, 0
      %p65 = por %p63, %p64
      %s66 = ssub.s32 %s11, %s18
      %p67 = scmp.eq.s32.totalorder %s66, 0
      %s69 = sadd.s32 %s68, 1
      %s70 = scalar_select %p67, %s68, %s69
      %p73 = pneg %p67
      %p74 = scmp.eq.s32.totalorder %s11, 1
      %p75 = por %p73, %p74
      %p76 = scmp.ne.s32.totalorder %s68, %s71
      %p77 = scmp.eq.s32.totalorder %s11, 0
      %p78 = por %p76, %p77
      %p79 = scmp.ne.s32.totalorder %s68, %s71
      %p80 = scmp.eq.s32.totalorder %s16, 1
      %p81 = por %p79, %p80
      %p82 = scmp.ne.s32.totalorder %s71, %s72
      %p83 = scmp.eq.s32.totalorder %s16, 0
      %p84 = por %p82, %p83
      %p85 = scmp.ne.s32.totalorder %s71, %s72
      %p86 = scmp.eq.s32.totalorder %s17, 1
      %p87 = por %p85, %p86
      %p89 = scmp.ne.s32.totalorder %s72, %s88
      %p90 = scmp.eq.s32.totalorder %s17, 0
      %p91 = por %p89, %p90
      %p92 = scmp.le.s32.totalorder 1, %s11
      %p93 = scmp.lt.s32.totalorder %s11, 3
      %p94 = pnand %p92, %p93
      %p95 = pneg %p94
      // Predicated region
      $region9: #{tpu_custom_call.1} parent=5 // pred_check
        _
      $region10: #{tpu_custom_call.1} parent=5 // pred_check_branch
        %97 = sbr.rel (%p94) target = $region12
      $region11: #{tpu_custom_call.1} parent=5 // pred_region
        %s98 = ssub.s32 %s11, 1
        // Predicated region
        $region13: #{tpu_custom_call.1} parent=11 // pred_check
          %p99 = pneg %p58
        $region14: #{tpu_custom_call.1} parent=11 // pred_check_branch
          %101 = sbr.rel (%p99) target = $region16
        $region15: #{tpu_custom_call.1} parent=11 // pred_region
          _
        $region16: #{tpu_custom_call.1} parent=11 // pred_fallthru
          _
      $region12: #{tpu_custom_call.1} parent=5 // pred_fallthru
        _
      %p102 = scmp.lt.s32.totalorder %s11, 2
      // Predicated region
      $region17: #{tpu_custom_call.1} parent=5 // pred_check
        %p103 = pneg %p102
      $region18: #{tpu_custom_call.1} parent=5 // pred_check_branch
        %105 = sbr.rel (%p103) target = $region20
      $region19: #{tpu_custom_call.1} parent=5 // pred_region
        // Predicated region
        $region21: #{tpu_custom_call.1} parent=19 // pred_check
          %p106 = pneg %p31
        $region22: #{tpu_custom_call.1} parent=19 // pred_check_branch
          %108 = sbr.rel (%p106) target = $region24
        $region23: #{tpu_custom_call.1} parent=19 // pred_region
          %s109 = smul.u32 2, %s11
          %p110 = scmp.lt.s32.totalorder %s109, 3
          %s111 = scalar_select %p110, %s109, 3
          %s112 = smul.addr %s111, 2
          %s113 = scalar_lea.vmem %s0, %s112
          %s114 = smul.u32 2, %s11
        $region24: #{tpu_custom_call.1} parent=19 // pred_fallthru
          _
      $region20: #{tpu_custom_call.1} parent=5 // pred_fallthru
        _
      %p115 = scmp.le.s32.totalorder 1, %s11
      %p116 = scmp.lt.s32.totalorder %s11, 3
      %p117 = pnand %p115, %p116
      %p118 = pneg %p117
      // Predicated region
      $region25: #{tpu_custom_call.1} parent=5 // pred_check
        _
      $region26: #{tpu_custom_call.1} parent=5 // pred_check_branch
        %120 = sbr.rel (%p117) target = $region28
      $region27: #{tpu_custom_call.1} parent=5 // pred_region
        %s121 = ssub.s32 %s11, 1
        %s122 = smul.u32 2, %s16
        %p123 = scmp.lt.s32.totalorder %s122, 3
        %s124 = scalar_select %p123, %s122, 3
        %s125 = smul.addr %s124, 2
        %s126 = scalar_lea.vmem %s0, %s125
        %p127 = pneg %p37
        %p128 = pneg %p34
        %p129 = pneg %p58
        %p130 = pneg %p55
        %p131 = pneg %p84
        %p132 = pneg %p81
        %s133 = sand.u32 %s71, 1
        %s134 = scalar_lea.sflag [#allocation3], %s133
        %s135 = sand.u32 %s71, 1
        %s136 = smul.addr %s135, 32
        %s137 = scalar_lea.vmem [#allocation2], %s136
        %s138 = smul.u32 2, %s16
        %p139 = scmp.lt.s32.totalorder %s138, 3
        %s140 = scalar_select %p139, %s138, 3
        %s141 = smul.addr %s140, 2
        %s142 = scalar_lea.vmem %s0, %s141
        %s143 = smul.u32 2, %s16
        %s144 = smul.u32 2, %s16
        %v145 = vld [vmem:[%s142] ss:$2 sm:$0x3]
        %v146 = vmul.f32 %v145, 0.2
        %s147 = scalar_lea.vmem %s142, 1
        %v148 = vld [vmem:[%s147] ss:$2 sm:$0x3]
        %v149 = vmax.f32 %v146, 1e-12
        %v150 = vrcp.pop %v149
        %v151 = vmul.f32 1.0, %v150
        %v152 = vmul.f32 %v149, %v149
        %v153 = vmul.f32 %v152, %v149
        %v154 = vmul.f32 %v153, %v149
        %v155 = vmul.f32 %v154, %v149
        %v156 = vmul.f32 %v155, %v149
        %v157 = vmul.f32 %v156, %v149
        %v158 = vmul.f32 %v155, -28.0
        %v159 = vadd.f32 %v151, %v158
        %v160 = vmul.f32 %v156, 48.0
        %v161 = vadd.f32 %v159, %v160
        %v162 = vmul.f32 %v157, -21.0
        %v163 = vadd.f32 %v161, %v162
        %v164 = vld [vmem:[%s1] sm:$0xff]
        %v165 = vld [vmem:[%s1 + $0x8] sm:$0xff]
        %167 = vset.pattern.permute.xlu0 0
        %168 = vperm.xlu0 %167, %v164
        %v169 = vpop.permute.xlu0 %168
        %172 = vset.pattern.permute.xlu0 0
        %173 = vperm.xlu0 %172, %v165
        %v174 = vpop.permute.xlu0 %173
        %v177 = vlaneseq
        %v178 = vshrl.u32 %v177, 7
        %v179 = vsub.s32 0, %v178
        %v180 = vrot.slane %v149, %v179
        %v181 = vlaneseq
        %v182 = vshrl.u32 %v181, 7
        %v183 = vsub.s32 1, %v182
        %v184 = vrot.slane %v149, %v183
        %v187 = vmul.f32 %v169, %v180
        %v188 = vmul.f32 %v169, %v184
        %v189 = vmul.f32 %v174, %v180
        %v190 = vmul.f32 %v174, %v184
        %191 = vset.pattern.permute.xlu0 1
        %192 = vperm.xlu0 %191, %v164
        %v193 = vpop.permute.xlu0 %192
        %195 = vset.pattern.permute.xlu0 1
        %196 = vperm.xlu0 %195, %v165
        %v197 = vpop.permute.xlu0 %196
        %v200 = vlaneseq
        %v201 = vshrl.u32 %v200, 7
        %v202 = vsub.s32 0, %v201
        %v203 = vrot.slane %v151, %v202
        %v204 = vlaneseq
        %v205 = vshrl.u32 %v204, 7
        %v206 = vsub.s32 1, %v205
        %v207 = vrot.slane %v151, %v206
        %v210 = vmul.f32 %v193, %v203
        %v211 = vmul.f32 %v193, %v207
        %v212 = vmul.f32 %v197, %v203
        %v213 = vmul.f32 %v197, %v207
        %v214 = vand.u32 2147483647, %v187
        %vm215 = vcmp.le.f32.partialorder %v214, 0.7853982
        %vm216 = vcmp.lt.s32.totalorder %v187, 0
        %v217 = vand.u32 %v187, 2139095040
        %v218 = vshrl.u32 %v217, 23
        %v219 = vsub.s32 %v218, 127
        %v220 = vand.u32 2147483647, %v187
        %v221 = vand.u32 %v220, 8388607
        %v222 = vor.u32 %v221, 8388608
        %v223 = vsub.s32 0, %v222
        %v224 = vadd.s32 %v219, 1
        %vm225 = vcmp.gt.s32.totalorder %v224, 0
        %v226 = vsel %vm225, %v224, 0
        %v227 = vshrl.u32 %v226, 5
        %v228 = vand.u32 %v226, 31
        %v229 = vsub.s32 32, %v228
        %v230 = vshrl.u32 683565275, %v229
        %v231 = vshll.u32 683565275, %v228
        %v232 = vshrl.u32 2475754826, %v229
        %v233 = vor.u32 %v231, %v232
        %v234 = vshll.u32 2475754826, %v228
        %v235 = vshrl.u32 2131351028, %v229
        %v236 = vor.u32 %v234, %v235
        %v237 = vshll.u32 2131351028, %v228
        %v238 = vshrl.u32 2102212464, %v229
        %v239 = vor.u32 %v237, %v238
        %v240 = vshll.u32 2102212464, %v228
        %v241 = vshrl.u32 920167782, %v229
        %v242 = vor.u32 %v240, %v241
        %v243 = vshll.u32 920167782, %v228
        %v244 = vshrl.u32 1326507024, %v229
        %v245 = vor.u32 %v243, %v244
        %vm246 = vcmp.lt.s32.totalorder %v227, 1
        %vm247 = vcmp.lt.s32.totalorder %v227, 2
        %vm248 = vcmp.lt.s32.totalorder %v227, 3
        %vm249 = vcmp.lt.s32.totalorder %v227, 4
        %v250 = vsel %vm246, %v230, %v233
        %v251 = vsel %vm249, %v239, 2102212464
        %v252 = vsel %vm248, %v236, %v251
        %v253 = vsel %vm247, %v250, %v252
        %v254 = vsel %vm246, %v233, %v236
        %v255 = vsel %vm249, %v242, 920167782
        %v256 = vsel %vm248, %v239, %v255
        %v257 = vsel %vm247, %v254, %v256
        %v258 = vsel %vm246, %v236, %v239
        %v259 = vsel %vm249, %v245, 1326507024
        %v260 = vsel %vm248, %v242, %v259
        %v261 = vsel %vm247, %v258, %v260
        %v262 = vshll.u32 %v222, 8
        %v263 = vmul.u32.u64.compose %v262, %v261
        %v264 = vextract.low.u32 %v263
        %v265 = vextract.high.u32 %v263
        %v266 = vmul.u32.u64.compose %v262, %v257
        %v267 = vextract.low.u32 %v266
        %v268 = vextract.high.u32 %v266
        %v269 = vmul.u32 %v262, %v253
        %v270 = vadd.s32 %v265, %v267
        %vm271 = vc.u32 %v265, %v267
        %v272 = vadd.s32 %v268, 1
        %v273 = vsel %vm271, %v272, %v268
        %v274 = vadd.s32 %v269, %v273
        %v275 = vadd.s32 %v274, 536870912
        %v276 = vshrl.u32 %v275, 30
        %v277 = vshll.u32 %v276, 30
        %v278 = vsub.s32 %v274, %v277
        %vm279 = vcmp.lt.s32.totalorder %v278, 0
        %v280 = vsub.s32 0, %v278
        %v281 = vsel %vm279, %v280, %v278
        %v282 = vclz %v281
        %v283 = vsub.s32 %v282, 2
        %vm284 = vcmp.gt.s32.totalorder 0, %v283
        %v285 = vsel %vm284, 0, %v283
        %v286 = vsub.s32 32, %v285
        %v287 = vshll.u32 %v278, %v285
        %v288 = vshrl.u32 %v270, %v286
        %v289 = vor.u32 %v287, %v288
        %v290 = vsub.s32 4294967266, %v285
        %v291 = vadd.s32 %v290, 127
        %v292 = vshll.u32 %v291, 23
        %v293 = vor.u32 4788187, %v292
        %v294 = vand.u32 2147483647, %v293
        %v296 = vcvt.s32.f32 %v289
        %v297 = vmul.f32 %v296, %v294
        %v298 = vxor.u32 %v297, 2147483648
        %v299 = vsel %vm216, %v298, %v297
        %v300 = vsub.s32 4, %v276
        %v301 = vsel %vm216, %v300, %v276
        %v302 = vsel %vm215, %v187, %v299
        %v303 = vsel %vm215, 0, %v301
        %v304 = vcosq.f32.pop %v302
        %v305 = vsinq.f32.pop %v302
        %vm306 = vweird.f32 %v187
        %v307 = vadd.s32 %v303, 3
        %v308 = vand.u32 %v307, 3
        %vm309 = vcmp.lt.s32.totalorder %v308, 2
        %vm310 = vcmp.eq.s32.totalorder %v308, 0
        %v311 = vxor.u32 %v305, 2147483648
        %v312 = vsel %vm310, %v304, %v311
        %vm313 = vcmp.eq.s32.totalorder %v308, 2
        %v314 = vxor.u32 %v304, 2147483648
        %v315 = vsel %vm313, %v314, %v305
        %v316 = vsel %vm309, %v312, %v315
        %v317 = vsel %vm306, nan, %v316
        %v318 = vand.u32 2147483647, %v188
        %vm319 = vcmp.le.f32.partialorder %v318, 0.7853982
        %vm320 = vcmp.lt.s32.totalorder %v188, 0
        %v321 = vand.u32 %v188, 2139095040
        %v322 = vshrl.u32 %v321, 23
        %v323 = vsub.s32 %v322, 127
        %v324 = vand.u32 2147483647, %v188
        %v325 = vand.u32 %v324, 8388607
        %v326 = vor.u32 %v325, 8388608
        %v327 = vsub.s32 0, %v326
        %v328 = vadd.s32 %v323, 1
        %vm329 = vcmp.gt.s32.totalorder %v328, 0
        %v330 = vsel %vm329, %v328, 0
        %v331 = vshrl.u32 %v330, 5
        %v332 = vand.u32 %v330, 31
        %v333 = vsub.s32 32, %v332
        %v334 = vshrl.u32 683565275, %v333
        %v335 = vshll.u32 683565275, %v332
        %v336 = vshrl.u32 2475754826, %v333
        %v337 = vor.u32 %v335, %v336
        %v338 = vshll.u32 2475754826, %v332
        %v339 = vshrl.u32 2131351028, %v333
        %v340 = vor.u32 %v338, %v339
        %v341 = vshll.u32 2131351028, %v332
        %v342 = vshrl.u32 2102212464, %v333
        %v343 = vor.u32 %v341, %v342
        %v344 = vshll.u32 2102212464, %v332
        %v345 = vshrl.u32 920167782, %v333
        %v346 = vor.u32 %v344, %v345
        %v347 = vshll.u32 920167782, %v332
        %v348 = vshrl.u32 1326507024, %v333
        %v349 = vor.u32 %v347, %v348
        %vm350 = vcmp.lt.s32.totalorder %v331, 1
        %vm351 = vcmp.lt.s32.totalorder %v331, 2
        %vm352 = vcmp.lt.s32.totalorder %v331, 3
        %vm353 = vcmp.lt.s32.totalorder %v331, 4
        %v354 = vsel %vm350, %v334, %v337
        %v355 = vsel %vm353, %v343, 2102212464
        %v356 = vsel %vm352, %v340, %v355
        %v357 = vsel %vm351, %v354, %v356
        %v358 = vsel %vm350, %v337, %v340
        %v359 = vsel %vm353, %v346, 920167782
        %v360 = vsel %vm352, %v343, %v359
        %v361 = vsel %vm351, %v358, %v360
        %v362 = vsel %vm350, %v340, %v343
        %v363 = vsel %vm353, %v349, 1326507024
        %v364 = vsel %vm352, %v346, %v363
        %v365 = vsel %vm351, %v362, %v364
        %v366 = vshll.u32 %v326, 8
        %v367 = vmul.u32.u64.compose %v366, %v365
        %v368 = vextract.low.u32 %v367
        %v369 = vextract.high.u32 %v367
        %v370 = vmul.u32.u64.compose %v366, %v361
        %v371 = vextract.low.u32 %v370
        %v372 = vextract.high.u32 %v370
        %v373 = vmul.u32 %v366, %v357
        %v374 = vadd.s32 %v369, %v371
        %vm375 = vc.u32 %v369, %v371
        %v376 = vadd.s32 %v372, 1
        %v377 = vsel %vm375, %v376, %v372
        %v378 = vadd.s32 %v373, %v377
        %v379 = vadd.s32 %v378, 536870912
        %v380 = vshrl.u32 %v379, 30
        %v381 = vshll.u32 %v380, 30
        %v382 = vsub.s32 %v378, %v381
        %vm383 = vcmp.lt.s32.totalorder %v382, 0
        %v384 = vsub.s32 0, %v382
        %v385 = vsel %vm383, %v384, %v382
        %v386 = vclz %v385
        %v387 = vsub.s32 %v386, 2
        %vm388 = vcmp.gt.s32.totalorder 0, %v387
        %v389 = vsel %vm388, 0, %v387
        %v390 = vsub.s32 32, %v389
        %v391 = vshll.u32 %v382, %v389
        %v392 = vshrl.u32 %v374, %v390
        %v393 = vor.u32 %v391, %v392
        %v394 = vsub.s32 4294967266, %v389
        %v395 = vadd.s32 %v394, 127
        %v396 = vshll.u32 %v395, 23
        %v397 = vor.u32 4788187, %v396
        %v398 = vand.u32 2147483647, %v397
        %v400 = vcvt.s32.f32 %v393
        %v401 = vmul.f32 %v400, %v398
        %v402 = vxor.u32 %v401, 2147483648
        %v403 = vsel %vm320, %v402, %v401
        %v404 = vsub.s32 4, %v380
        %v405 = vsel %vm320, %v404, %v380
        %v406 = vsel %vm319, %v188, %v403
        %v407 = vsel %vm319, 0, %v405
        %v408 = vcosq.f32.pop %v406
        %v409 = vsinq.f32.pop %v406
        %vm410 = vweird.f32 %v188
        %v411 = vadd.s32 %v407, 3
        %v412 = vand.u32 %v411, 3
        %vm413 = vcmp.lt.s32.totalorder %v412, 2
        %vm414 = vcmp.eq.s32.totalorder %v412, 0
        %v415 = vxor.u32 %v409, 2147483648
        %v416 = vsel %vm414, %v408, %v415
        %vm417 = vcmp.eq.s32.totalorder %v412, 2
        %v418 = vxor.u32 %v408, 2147483648
        %v419 = vsel %vm417, %v418, %v409
        %v420 = vsel %vm413, %v416, %v419
        %v421 = vsel %vm410, nan, %v420
        %v422 = vand.u32 2147483647, %v189
        %vm423 = vcmp.le.f32.partialorder %v422, 0.7853982
        %vm424 = vcmp.lt.s32.totalorder %v189, 0
        %v425 = vand.u32 %v189, 2139095040
        %v426 = vshrl.u32 %v425, 23
        %v427 = vsub.s32 %v426, 127
        %v428 = vand.u32 2147483647, %v189
        %v429 = vand.u32 %v428, 8388607
        %v430 = vor.u32 %v429, 8388608
        %v431 = vsub.s32 0, %v430
        %v432 = vadd.s32 %v427, 1
        %vm433 = vcmp.gt.s32.totalorder %v432, 0
        %v434 = vsel %vm433, %v432, 0
        %v435 = vshrl.u32 %v434, 5
        %v436 = vand.u32 %v434, 31
        %v437 = vsub.s32 32, %v436
        %v438 = vshrl.u32 683565275, %v437
        %v439 = vshll.u32 683565275, %v436
        %v440 = vshrl.u32 2475754826, %v437
        %v441 = vor.u32 %v439, %v440
        %v442 = vshll.u32 2475754826, %v436
        %v443 = vshrl.u32 2131351028, %v437
        %v444 = vor.u32 %v442, %v443
        %v445 = vshll.u32 2131351028, %v436
        %v446 = vshrl.u32 2102212464, %v437
        %v447 = vor.u32 %v445, %v446
        %v448 = vshll.u32 2102212464, %v436
        %v449 = vshrl.u32 920167782, %v437
        %v450 = vor.u32 %v448, %v449
        %v451 = vshll.u32 920167782, %v436
        %v452 = vshrl.u32 1326507024, %v437
        %v453 = vor.u32 %v451, %v452
        %vm454 = vcmp.lt.s32.totalorder %v435, 1
        %vm455 = vcmp.lt.s32.totalorder %v435, 2
        %vm456 = vcmp.lt.s32.totalorder %v435, 3
        %vm457 = vcmp.lt.s32.totalorder %v435, 4
        %v458 = vsel %vm454, %v438, %v441
        %v459 = vsel %vm457, %v447, 2102212464
        %v460 = vsel %vm456, %v444, %v459
        %v461 = vsel %vm455, %v458, %v460
        %v462 = vsel %vm454, %v441, %v444
        %v463 = vsel %vm457, %v450, 920167782
        %v464 = vsel %vm456, %v447, %v463
        %v465 = vsel %vm455, %v462, %v464
        %v466 = vsel %vm454, %v444, %v447
        %v467 = vsel %vm457, %v453, 1326507024
        %v468 = vsel %vm456, %v450, %v467
        %v469 = vsel %vm455, %v466, %v468
        %v470 = vshll.u32 %v430, 8
        %v471 = vmul.u32.u64.compose %v470, %v469
        %v472 = vextract.low.u32 %v471
        %v473 = vextract.high.u32 %v471
        %v474 = vmul.u32.u64.compose %v470, %v465
        %v475 = vextract.low.u32 %v474
        %v476 = vextract.high.u32 %v474
        %v477 = vmul.u32 %v470, %v461
        %v478 = vadd.s32 %v473, %v475
        %vm479 = vc.u32 %v473, %v475
        %v480 = vadd.s32 %v476, 1
        %v481 = vsel %vm479, %v480, %v476
        %v482 = vadd.s32 %v477, %v481
        %v483 = vadd.s32 %v482, 536870912
        %v484 = vshrl.u32 %v483, 30
        %v485 = vshll.u32 %v484, 30
        %v486 = vsub.s32 %v482, %v485
        %vm487 = vcmp.lt.s32.totalorder %v486, 0
        %v488 = vsub.s32 0, %v486
        %v489 = vsel %vm487, %v488, %v486
        %v490 = vclz %v489
        %v491 = vsub.s32 %v490, 2
        %vm492 = vcmp.gt.s32.totalorder 0, %v491
        %v493 = vsel %vm492, 0, %v491
        %v494 = vsub.s32 32, %v493
        %v495 = vshll.u32 %v486, %v493
        %v496 = vshrl.u32 %v478, %v494
        %v497 = vor.u32 %v495, %v496
        %v498 = vsub.s32 4294967266, %v493
        %v499 = vadd.s32 %v498, 127
        %v500 = vshll.u32 %v499, 23
        %v501 = vor.u32 4788187, %v500
        %v502 = vand.u32 2147483647, %v501
        %v504 = vcvt.s32.f32 %v497
        %v505 = vmul.f32 %v504, %v502
        %v506 = vxor.u32 %v505, 2147483648
        %v507 = vsel %vm424, %v506, %v505
        %v508 = vsub.s32 4, %v484
        %v509 = vsel %vm424, %v508, %v484
        %v510 = vsel %vm423, %v189, %v507
        %v511 = vsel %vm423, 0, %v509
        %v512 = vcosq.f32.pop %v510
        %v513 = vsinq.f32.pop %v510
        %vm514 = vweird.f32 %v189
        %v515 = vadd.s32 %v511, 3
        %v516 = vand.u32 %v515, 3
        %vm517 = vcmp.lt.s32.totalorder %v516, 2
        %vm518 = vcmp.eq.s32.totalorder %v516, 0
        %v519 = vxor.u32 %v513, 2147483648
        %v520 = vsel %vm518, %v512, %v519
        %vm521 = vcmp.eq.s32.totalorder %v516, 2
        %v522 = vxor.u32 %v512, 2147483648
        %v523 = vsel %vm521, %v522, %v513
        %v524 = vsel %vm517, %v520, %v523
        %v525 = vsel %vm514, nan, %v524
        %v526 = vand.u32 2147483647, %v190
        %vm527 = vcmp.le.f32.partialorder %v526, 0.7853982
        %vm528 = vcmp.lt.s32.totalorder %v190, 0
        %v529 = vand.u32 %v190, 2139095040
        %v530 = vshrl.u32 %v529, 23
        %v531 = vsub.s32 %v530, 127
        %v532 = vand.u32 2147483647, %v190
        %v533 = vand.u32 %v532, 8388607
        %v534 = vor.u32 %v533, 8388608
        %v535 = vsub.s32 0, %v534
        %v536 = vadd.s32 %v531, 1
        %vm537 = vcmp.gt.s32.totalorder %v536, 0
        %v538 = vsel %vm537, %v536, 0
        %v539 = vshrl.u32 %v538, 5
        %v540 = vand.u32 %v538, 31
        %v541 = vsub.s32 32, %v540
        %v542 = vshrl.u32 683565275, %v541
        %v543 = vshll.u32 683565275, %v540
        %v544 = vshrl.u32 2475754826, %v541
        %v545 = vor.u32 %v543, %v544
        %v546 = vshll.u32 2475754826, %v540
        %v547 = vshrl.u32 2131351028, %v541
        %v548 = vor.u32 %v546, %v547
        %v549 = vshll.u32 2131351028, %v540
        %v550 = vshrl.u32 2102212464, %v541
        %v551 = vor.u32 %v549, %v550
        %v552 = vshll.u32 2102212464, %v540
        %v553 = vshrl.u32 920167782, %v541
        %v554 = vor.u32 %v552, %v553
        %v555 = vshll.u32 920167782, %v540
        %v556 = vshrl.u32 1326507024, %v541
        %v557 = vor.u32 %v555, %v556
        %vm558 = vcmp.lt.s32.totalorder %v539, 1
        %vm559 = vcmp.lt.s32.totalorder %v539, 2
        %vm560 = vcmp.lt.s32.totalorder %v539, 3
        %vm561 = vcmp.lt.s32.totalorder %v539, 4
        %v562 = vsel %vm558, %v542, %v545
        %v563 = vsel %vm561, %v551, 2102212464
        %v564 = vsel %vm560, %v548, %v563
        %v565 = vsel %vm559, %v562, %v564
        %v566 = vsel %vm558, %v545, %v548
        %v567 = vsel %vm561, %v554, 920167782
        %v568 = vsel %vm560, %v551, %v567
        %v569 = vsel %vm559, %v566, %v568
        %v570 = vsel %vm558, %v548, %v551
        %v571 = vsel %vm561, %v557, 1326507024
        %v572 = vsel %vm560, %v554, %v571
        %v573 = vsel %vm559, %v570, %v572
        %v574 = vshll.u32 %v534, 8
        %v575 = vmul.u32.u64.compose %v574, %v573
        %v576 = vextract.low.u32 %v575
        %v577 = vextract.high.u32 %v575
        %v578 = vmul.u32.u64.compose %v574, %v569
        %v579 = vextract.low.u32 %v578
        %v580 = vextract.high.u32 %v578
        %v581 = vmul.u32 %v574, %v565
        %v582 = vadd.s32 %v577, %v579
        %vm583 = vc.u32 %v577, %v579
        %v584 = vadd.s32 %v580, 1
        %v585 = vsel %vm583, %v584, %v580
        %v586 = vadd.s32 %v581, %v585
        %v587 = vadd.s32 %v586, 536870912
        %v588 = vshrl.u32 %v587, 30
        %v589 = vshll.u32 %v588, 30
        %v590 = vsub.s32 %v586, %v589
        %vm591 = vcmp.lt.s32.totalorder %v590, 0
        %v592 = vsub.s32 0, %v590
        %v593 = vsel %vm591, %v592, %v590
        %v594 = vclz %v593
        %v595 = vsub.s32 %v594, 2
        %vm596 = vcmp.gt.s32.totalorder 0, %v595
        %v597 = vsel %vm596, 0, %v595
        %v598 = vsub.s32 32, %v597
        %v599 = vshll.u32 %v590, %v597
        %v600 = vshrl.u32 %v582, %v598
        %v601 = vor.u32 %v599, %v600
        %v602 = vsub.s32 4294967266, %v597
        %v603 = vadd.s32 %v602, 127
        %v604 = vshll.u32 %v603, 23
        %v605 = vor.u32 4788187, %v604
        %v606 = vand.u32 2147483647, %v605
        %v608 = vcvt.s32.f32 %v601
        %v609 = vmul.f32 %v608, %v606
        %v610 = vxor.u32 %v609, 2147483648
        %v611 = vsel %vm528, %v610, %v609
        %v612 = vsub.s32 4, %v588
        %v613 = vsel %vm528, %v612, %v588
        %v614 = vsel %vm527, %v190, %v611
        %v615 = vsel %vm527, 0, %v613
        %v616 = vcosq.f32.pop %v614
        %v617 = vsinq.f32.pop %v614
        %vm618 = vweird.f32 %v190
        %v619 = vadd.s32 %v615, 3
        %v620 = vand.u32 %v619, 3
        %vm621 = vcmp.lt.s32.totalorder %v620, 2
        %vm622 = vcmp.eq.s32.totalorder %v620, 0
        %v623 = vxor.u32 %v617, 2147483648
        %v624 = vsel %vm622, %v616, %v623
        %vm625 = vcmp.eq.s32.totalorder %v620, 2
        %v626 = vxor.u32 %v616, 2147483648
        %v627 = vsel %vm625, %v626, %v617
        %v628 = vsel %vm621, %v624, %v627
        %v629 = vsel %vm618, nan, %v628
        %v630 = vand.u32 2147483647, %v187
        %vm631 = vcmp.le.f32.partialorder %v630, 0.7853982
        %vm632 = vcmp.lt.s32.totalorder %v187, 0
        %v633 = vand.u32 %v187, 2139095040
        %v634 = vshrl.u32 %v633, 23
        %v635 = vsub.s32 %v634, 127
        %v636 = vand.u32 2147483647, %v187
        %v637 = vand.u32 %v636, 8388607
        %v638 = vor.u32 %v637, 8388608
        %v639 = vsub.s32 0, %v638
        %v640 = vadd.s32 %v635, 1
        %vm641 = vcmp.gt.s32.totalorder %v640, 0
        %v642 = vsel %vm641, %v640, 0
        %v643 = vshrl.u32 %v642, 5
        %v644 = vand.u32 %v642, 31
        %v645 = vsub.s32 32, %v644
        %v646 = vshrl.u32 683565275, %v645
        %v647 = vshll.u32 683565275, %v644
        %v648 = vshrl.u32 2475754826, %v645
        %v649 = vor.u32 %v647, %v648
        %v650 = vshll.u32 2475754826, %v644
        %v651 = vshrl.u32 2131351028, %v645
        %v652 = vor.u32 %v650, %v651
        %v653 = vshll.u32 2131351028, %v644
        %v654 = vshrl.u32 2102212464, %v645
        %v655 = vor.u32 %v653, %v654
        %v656 = vshll.u32 2102212464, %v644
        %v657 = vshrl.u32 920167782, %v645
        %v658 = vor.u32 %v656, %v657
        %v659 = vshll.u32 920167782, %v644
        %v660 = vshrl.u32 1326507024, %v645
        %v661 = vor.u32 %v659, %v660
        %vm662 = vcmp.lt.s32.totalorder %v643, 1
        %vm663 = vcmp.lt.s32.totalorder %v643, 2
        %vm664 = vcmp.lt.s32.totalorder %v643, 3
        %vm665 = vcmp.lt.s32.totalorder %v643, 4
        %v666 = vsel %vm662, %v646, %v649
        %v667 = vsel %vm665, %v655, 2102212464
        %v668 = vsel %vm664, %v652, %v667
        %v669 = vsel %vm663, %v666, %v668
        %v670 = vsel %vm662, %v649, %v652
        %v671 = vsel %vm665, %v658, 920167782
        %v672 = vsel %vm664, %v655, %v671
        %v673 = vsel %vm663, %v670, %v672
        %v674 = vsel %vm662, %v652, %v655
        %v675 = vsel %vm665, %v661, 1326507024
        %v676 = vsel %vm664, %v658, %v675
        %v677 = vsel %vm663, %v674, %v676
        %v678 = vshll.u32 %v638, 8
        %v679 = vmul.u32.u64.compose %v678, %v677
        %v680 = vextract.low.u32 %v679
        %v681 = vextract.high.u32 %v679
        %v682 = vmul.u32.u64.compose %v678, %v673
        %v683 = vextract.low.u32 %v682
        %v684 = vextract.high.u32 %v682
        %v685 = vmul.u32 %v678, %v669
        %v686 = vadd.s32 %v681, %v683
        %vm687 = vc.u32 %v681, %v683
        %v688 = vadd.s32 %v684, 1
        %v689 = vsel %vm687, %v688, %v684
        %v690 = vadd.s32 %v685, %v689
        %v691 = vadd.s32 %v690, 536870912
        %v692 = vshrl.u32 %v691, 30
        %v693 = vshll.u32 %v692, 30
        %v694 = vsub.s32 %v690, %v693
        %vm695 = vcmp.lt.s32.totalorder %v694, 0
        %v696 = vsub.s32 0, %v694
        %v697 = vsel %vm695, %v696, %v694
        %v698 = vclz %v697
        %v699 = vsub.s32 %v698, 2
        %vm700 = vcmp.gt.s32.totalorder 0, %v699
        %v701 = vsel %vm700, 0, %v699
        %v702 = vsub.s32 32, %v701
        %v703 = vshll.u32 %v694, %v701
        %v704 = vshrl.u32 %v686, %v702
        %v705 = vor.u32 %v703, %v704
        %v706 = vsub.s32 4294967266, %v701
        %v707 = vadd.s32 %v706, 127
        %v708 = vshll.u32 %v707, 23
        %v709 = vor.u32 4788187, %v708
        %v710 = vand.u32 2147483647, %v709
        %v712 = vcvt.s32.f32 %v705
        %v713 = vmul.f32 %v712, %v710
        %v714 = vxor.u32 %v713, 2147483648
        %v715 = vsel %vm632, %v714, %v713
        %v716 = vsub.s32 4, %v692
        %v717 = vsel %vm632, %v716, %v692
        %v718 = vsel %vm631, %v187, %v715
        %v719 = vsel %vm631, 0, %v717
        %v720 = vcosq.f32.pop %v718
        %v721 = vsinq.f32.pop %v718
        %vm722 = vweird.f32 %v187
        %v723 = vand.u32 %v719, 3
        %vm724 = vcmp.lt.s32.totalorder %v723, 2
        %vm725 = vcmp.eq.s32.totalorder %v723, 0
        %v726 = vxor.u32 %v721, 2147483648
        %v727 = vsel %vm725, %v720, %v726
        %vm728 = vcmp.eq.s32.totalorder %v723, 2
        %v729 = vxor.u32 %v720, 2147483648
        %v730 = vsel %vm728, %v729, %v721
        %v731 = vsel %vm724, %v727, %v730
        %v732 = vsel %vm722, nan, %v731
        %v733 = vand.u32 2147483647, %v188
        %vm734 = vcmp.le.f32.partialorder %v733, 0.7853982
        %vm735 = vcmp.lt.s32.totalorder %v188, 0
        %v736 = vand.u32 %v188, 2139095040
        %v737 = vshrl.u32 %v736, 23
        %v738 = vsub.s32 %v737, 127
        %v739 = vand.u32 2147483647, %v188
        %v740 = vand.u32 %v739, 8388607
        %v741 = vor.u32 %v740, 8388608
        %v742 = vsub.s32 0, %v741
        %v743 = vadd.s32 %v738, 1
        %vm744 = vcmp.gt.s32.totalorder %v743, 0
        %v745 = vsel %vm744, %v743, 0
        %v746 = vshrl.u32 %v745, 5
        %v747 = vand.u32 %v745, 31
        %v748 = vsub.s32 32, %v747
        %v749 = vshrl.u32 683565275, %v748
        %v750 = vshll.u32 683565275, %v747
        %v751 = vshrl.u32 2475754826, %v748
        %v752 = vor.u32 %v750, %v751
        %v753 = vshll.u32 2475754826, %v747
        %v754 = vshrl.u32 2131351028, %v748
        %v755 = vor.u32 %v753, %v754
        %v756 = vshll.u32 2131351028, %v747
        %v757 = vshrl.u32 2102212464, %v748
        %v758 = vor.u32 %v756, %v757
        %v759 = vshll.u32 2102212464, %v747
        %v760 = vshrl.u32 920167782, %v748
        %v761 = vor.u32 %v759, %v760
        %v762 = vshll.u32 920167782, %v747
        %v763 = vshrl.u32 1326507024, %v748
        %v764 = vor.u32 %v762, %v763
        %vm765 = vcmp.lt.s32.totalorder %v746, 1
        %vm766 = vcmp.lt.s32.totalorder %v746, 2
        %vm767 = vcmp.lt.s32.totalorder %v746, 3
        %vm768 = vcmp.lt.s32.totalorder %v746, 4
        %v769 = vsel %vm765, %v749, %v752
        %v770 = vsel %vm768, %v758, 2102212464
        %v771 = vsel %vm767, %v755, %v770
        %v772 = vsel %vm766, %v769, %v771
        %v773 = vsel %vm765, %v752, %v755
        %v774 = vsel %vm768, %v761, 920167782
        %v775 = vsel %vm767, %v758, %v774
        %v776 = vsel %vm766, %v773, %v775
        %v777 = vsel %vm765, %v755, %v758
        %v778 = vsel %vm768, %v764, 1326507024
        %v779 = vsel %vm767, %v761, %v778
        %v780 = vsel %vm766, %v777, %v779
        %v781 = vshll.u32 %v741, 8
        %v782 = vmul.u32.u64.compose %v781, %v780
        %v783 = vextract.low.u32 %v782
        %v784 = vextract.high.u32 %v782
        %v785 = vmul.u32.u64.compose %v781, %v776
        %v786 = vextract.low.u32 %v785
        %v787 = vextract.high.u32 %v785
        %v788 = vmul.u32 %v781, %v772
        %v789 = vadd.s32 %v784, %v786
        %vm790 = vc.u32 %v784, %v786
        %v791 = vadd.s32 %v787, 1
        %v792 = vsel %vm790, %v791, %v787
        %v793 = vadd.s32 %v788, %v792
        %v794 = vadd.s32 %v793, 536870912
        %v795 = vshrl.u32 %v794, 30
        %v796 = vshll.u32 %v795, 30
        %v797 = vsub.s32 %v793, %v796
        %vm798 = vcmp.lt.s32.totalorder %v797, 0
        %v799 = vsub.s32 0, %v797
        %v800 = vsel %vm798, %v799, %v797
        %v801 = vclz %v800
        %v802 = vsub.s32 %v801, 2
        %vm803 = vcmp.gt.s32.totalorder 0, %v802
        %v804 = vsel %vm803, 0, %v802
        %v805 = vsub.s32 32, %v804
        %v806 = vshll.u32 %v797, %v804
        %v807 = vshrl.u32 %v789, %v805
        %v808 = vor.u32 %v806, %v807
        %v809 = vsub.s32 4294967266, %v804
        %v810 = vadd.s32 %v809, 127
        %v811 = vshll.u32 %v810, 23
        %v812 = vor.u32 4788187, %v811
        %v813 = vand.u32 2147483647, %v812
        %v815 = vcvt.s32.f32 %v808
        %v816 = vmul.f32 %v815, %v813
        %v817 = vxor.u32 %v816, 2147483648
        %v818 = vsel %vm735, %v817, %v816
        %v819 = vsub.s32 4, %v795
        %v820 = vsel %vm735, %v819, %v795
        %v821 = vsel %vm734, %v188, %v818
        %v822 = vsel %vm734, 0, %v820
        %v823 = vcosq.f32.pop %v821
        %v824 = vsinq.f32.pop %v821
        %vm825 = vweird.f32 %v188
        %v826 = vand.u32 %v822, 3
        %vm827 = vcmp.lt.s32.totalorder %v826, 2
        %vm828 = vcmp.eq.s32.totalorder %v826, 0
        %v829 = vxor.u32 %v824, 2147483648
        %v830 = vsel %vm828, %v823, %v829
        %vm831 = vcmp.eq.s32.totalorder %v826, 2
        %v832 = vxor.u32 %v823, 2147483648
        %v833 = vsel %vm831, %v832, %v824
        %v834 = vsel %vm827, %v830, %v833
        %v835 = vsel %vm825, nan, %v834
        %v836 = vand.u32 2147483647, %v189
        %vm837 = vcmp.le.f32.partialorder %v836, 0.7853982
        %vm838 = vcmp.lt.s32.totalorder %v189, 0
        %v839 = vand.u32 %v189, 2139095040
        %v840 = vshrl.u32 %v839, 23
        %v841 = vsub.s32 %v840, 127
        %v842 = vand.u32 2147483647, %v189
        %v843 = vand.u32 %v842, 8388607
        %v844 = vor.u32 %v843, 8388608
        %v845 = vsub.s32 0, %v844
        %v846 = vadd.s32 %v841, 1
        %vm847 = vcmp.gt.s32.totalorder %v846, 0
        %v848 = vsel %vm847, %v846, 0
        %v849 = vshrl.u32 %v848, 5
        %v850 = vand.u32 %v848, 31
        %v851 = vsub.s32 32, %v850
        %v852 = vshrl.u32 683565275, %v851
        %v853 = vshll.u32 683565275, %v850
        %v854 = vshrl.u32 2475754826, %v851
        %v855 = vor.u32 %v853, %v854
        %v856 = vshll.u32 2475754826, %v850
        %v857 = vshrl.u32 2131351028, %v851
        %v858 = vor.u32 %v856, %v857
        %v859 = vshll.u32 2131351028, %v850
        %v860 = vshrl.u32 2102212464, %v851
        %v861 = vor.u32 %v859, %v860
        %v862 = vshll.u32 2102212464, %v850
        %v863 = vshrl.u32 920167782, %v851
        %v864 = vor.u32 %v862, %v863
        %v865 = vshll.u32 920167782, %v850
        %v866 = vshrl.u32 1326507024, %v851
        %v867 = vor.u32 %v865, %v866
        %vm868 = vcmp.lt.s32.totalorder %v849, 1
        %vm869 = vcmp.lt.s32.totalorder %v849, 2
        %vm870 = vcmp.lt.s32.totalorder %v849, 3
        %vm871 = vcmp.lt.s32.totalorder %v849, 4
        %v872 = vsel %vm868, %v852, %v855
        %v873 = vsel %vm871, %v861, 2102212464
        %v874 = vsel %vm870, %v858, %v873
        %v875 = vsel %vm869, %v872, %v874
        %v876 = vsel %vm868, %v855, %v858
        %v877 = vsel %vm871, %v864, 920167782
        %v878 = vsel %vm870, %v861, %v877
        %v879 = vsel %vm869, %v876, %v878
        %v880 = vsel %vm868, %v858, %v861
        %v881 = vsel %vm871, %v867, 1326507024
        %v882 = vsel %vm870, %v864, %v881
        %v883 = vsel %vm869, %v880, %v882
        %v884 = vshll.u32 %v844, 8
        %v885 = vmul.u32.u64.compose %v884, %v883
        %v886 = vextract.low.u32 %v885
        %v887 = vextract.high.u32 %v885
        %v888 = vmul.u32.u64.compose %v884, %v879
        %v889 = vextract.low.u32 %v888
        %v890 = vextract.high.u32 %v888
        %v891 = vmul.u32 %v884, %v875
        %v892 = vadd.s32 %v887, %v889
        %vm893 = vc.u32 %v887, %v889
        %v894 = vadd.s32 %v890, 1
        %v895 = vsel %vm893, %v894, %v890
        %v896 = vadd.s32 %v891, %v895
        %v897 = vadd.s32 %v896, 536870912
        %v898 = vshrl.u32 %v897, 30
        %v899 = vshll.u32 %v898, 30
        %v900 = vsub.s32 %v896, %v899
        %vm901 = vcmp.lt.s32.totalorder %v900, 0
        %v902 = vsub.s32 0, %v900
        %v903 = vsel %vm901, %v902, %v900
        %v904 = vclz %v903
        %v905 = vsub.s32 %v904, 2
        %vm906 = vcmp.gt.s32.totalorder 0, %v905
        %v907 = vsel %vm906, 0, %v905
        %v908 = vsub.s32 32, %v907
        %v909 = vshll.u32 %v900, %v907
        %v910 = vshrl.u32 %v892, %v908
        %v911 = vor.u32 %v909, %v910
        %v912 = vsub.s32 4294967266, %v907
        %v913 = vadd.s32 %v912, 127
        %v914 = vshll.u32 %v913, 23
        %v915 = vor.u32 4788187, %v914
        %v916 = vand.u32 2147483647, %v915
        %v918 = vcvt.s32.f32 %v911
        %v919 = vmul.f32 %v918, %v916
        %v920 = vxor.u32 %v919, 2147483648
        %v921 = vsel %vm838, %v920, %v919
        %v922 = vsub.s32 4, %v898
        %v923 = vsel %vm838, %v922, %v898
        %v924 = vsel %vm837, %v189, %v921
        %v925 = vsel %vm837, 0, %v923
        %v926 = vcosq.f32.pop %v924
        %v927 = vsinq.f32.pop %v924
        %vm928 = vweird.f32 %v189
        %v929 = vand.u32 %v925, 3
        %vm930 = vcmp.lt.s32.totalorder %v929, 2
        %vm931 = vcmp.eq.s32.totalorder %v929, 0
        %v932 = vxor.u32 %v927, 2147483648
        %v933 = vsel %vm931, %v926, %v932
        %vm934 = vcmp.eq.s32.totalorder %v929, 2
        %v935 = vxor.u32 %v926, 2147483648
        %v936 = vsel %vm934, %v935, %v927
        %v937 = vsel %vm930, %v933, %v936
        %v938 = vsel %vm928, nan, %v937
        %v939 = vand.u32 2147483647, %v190
        %vm940 = vcmp.le.f32.partialorder %v939, 0.7853982
        %vm941 = vcmp.lt.s32.totalorder %v190, 0
        %v942 = vand.u32 %v190, 2139095040
        %v943 = vshrl.u32 %v942, 23
        %v944 = vsub.s32 %v943, 127
        %v945 = vand.u32 2147483647, %v190
        %v946 = vand.u32 %v945, 8388607
        %v947 = vor.u32 %v946, 8388608
        %v948 = vsub.s32 0, %v947
        %v949 = vadd.s32 %v944, 1
        %vm950 = vcmp.gt.s32.totalorder %v949, 0
        %v951 = vsel %vm950, %v949, 0
        %v952 = vshrl.u32 %v951, 5
        %v953 = vand.u32 %v951, 31
        %v954 = vsub.s32 32, %v953
        %v955 = vshrl.u32 683565275, %v954
        %v956 = vshll.u32 683565275, %v953
        %v957 = vshrl.u32 2475754826, %v954
        %v958 = vor.u32 %v956, %v957
        %v959 = vshll.u32 2475754826, %v953
        %v960 = vshrl.u32 2131351028, %v954
        %v961 = vor.u32 %v959, %v960
        %v962 = vshll.u32 2131351028, %v953
        %v963 = vshrl.u32 2102212464, %v954
        %v964 = vor.u32 %v962, %v963
        %v965 = vshll.u32 2102212464, %v953
        %v966 = vshrl.u32 920167782, %v954
        %v967 = vor.u32 %v965, %v966
        %v968 = vshll.u32 920167782, %v953
        %v969 = vshrl.u32 1326507024, %v954
        %v970 = vor.u32 %v968, %v969
        %vm971 = vcmp.lt.s32.totalorder %v952, 1
        %vm972 = vcmp.lt.s32.totalorder %v952, 2
        %vm973 = vcmp.lt.s32.totalorder %v952, 3
        %vm974 = vcmp.lt.s32.totalorder %v952, 4
        %v975 = vsel %vm971, %v955, %v958
        %v976 = vsel %vm974, %v964, 2102212464
        %v977 = vsel %vm973, %v961, %v976
        %v978 = vsel %vm972, %v975, %v977
        %v979 = vsel %vm971, %v958, %v961
        %v980 = vsel %vm974, %v967, 920167782
        %v981 = vsel %vm973, %v964, %v980
        %v982 = vsel %vm972, %v979, %v981
        %v983 = vsel %vm971, %v961, %v964
        %v984 = vsel %vm974, %v970, 1326507024
        %v985 = vsel %vm973, %v967, %v984
        %v986 = vsel %vm972, %v983, %v985
        %v987 = vshll.u32 %v947, 8
        %v988 = vmul.u32.u64.compose %v987, %v986
        %v989 = vextract.low.u32 %v988
        %v990 = vextract.high.u32 %v988
        %v991 = vmul.u32.u64.compose %v987, %v982
        %v992 = vextract.low.u32 %v991
        %v993 = vextract.high.u32 %v991
        %v994 = vmul.u32 %v987, %v978
        %v995 = vadd.s32 %v990, %v992
        %vm996 = vc.u32 %v990, %v992
        %v997 = vadd.s32 %v993, 1
        %v998 = vsel %vm996, %v997, %v993
        %v999 = vadd.s32 %v994, %v998
        %v1000 = vadd.s32 %v999, 536870912
        %v1001 = vshrl.u32 %v1000, 30
        %v1002 = vshll.u32 %v1001, 30
        %v1003 = vsub.s32 %v999, %v1002
        %vm1004 = vcmp.lt.s32.totalorder %v1003, 0
        %v1005 = vsub.s32 0, %v1003
        %v1006 = vsel %vm1004, %v1005, %v1003
        %v1007 = vclz %v1006
        %v1008 = vsub.s32 %v1007, 2
        %vm1009 = vcmp.gt.s32.totalorder 0, %v1008
        %v1010 = vsel %vm1009, 0, %v1008
        %v1011 = vsub.s32 32, %v1010
        %v1012 = vshll.u32 %v1003, %v1010
        %v1013 = vshrl.u32 %v995, %v1011
        %v1014 = vor.u32 %v1012, %v1013
        %v1015 = vsub.s32 4294967266, %v1010
        %v1016 = vadd.s32 %v1015, 127
        %v1017 = vshll.u32 %v1016, 23
        %v1018 = vor.u32 4788187, %v1017
        %v1019 = vand.u32 2147483647, %v1018
        %v1021 = vcvt.s32.f32 %v1014
        %v1022 = vmul.f32 %v1021, %v1019
        %v1023 = vxor.u32 %v1022, 2147483648
        %v1024 = vsel %vm941, %v1023, %v1022
        %v1025 = vsub.s32 4, %v1001
        %v1026 = vsel %vm941, %v1025, %v1001
        %v1027 = vsel %vm940, %v190, %v1024
        %v1028 = vsel %vm940, 0, %v1026
        %v1029 = vcosq.f32.pop %v1027
        %v1030 = vsinq.f32.pop %v1027
        %vm1031 = vweird.f32 %v190
        %v1032 = vand.u32 %v1028, 3
        %vm1033 = vcmp.lt.s32.totalorder %v1032, 2
        %vm1034 = vcmp.eq.s32.totalorder %v1032, 0
        %v1035 = vxor.u32 %v1030, 2147483648
        %v1036 = vsel %vm1034, %v1029, %v1035
        %vm1037 = vcmp.eq.s32.totalorder %v1032, 2
        %v1038 = vxor.u32 %v1029, 2147483648
        %v1039 = vsel %vm1037, %v1038, %v1030
        %v1040 = vsel %vm1033, %v1036, %v1039
        %v1041 = vsel %vm1031, nan, %v1040
        %v1042 = vmul.f32 %v317, %v210
        %v1043 = vmul.f32 %v421, %v211
        %v1044 = vmul.f32 %v525, %v212
        %v1045 = vmul.f32 %v629, %v213
        %v1046 = vsub.f32 %v1042, %v732
        %v1047 = vsub.f32 %v1043, %v835
        %v1048 = vsub.f32 %v1044, %v938
        %v1049 = vsub.f32 %v1045, %v1041
        %v1050 = vmul.f32 %v1046, %v210
        %v1051 = vmul.f32 %v1047, %v211
        %v1052 = vmul.f32 %v1048, %v212
        %v1053 = vmul.f32 %v1049, %v213
        %v1054 = vmul.f32 %v210, 3.0
        %v1055 = vmul.f32 %v211, 3.0
        %v1056 = vmul.f32 %v212, 3.0
        %v1057 = vmul.f32 %v213, 3.0
        %v1058 = vmul.f32 %v1054, %v1050
        %v1059 = vmul.f32 %v1055, %v1051
        %v1060 = vmul.f32 %v1056, %v1052
        %v1061 = vmul.f32 %v1057, %v1053
        %v1062 = vsub.f32 %v1058, %v1042
        %v1063 = vsub.f32 %v1059, %v1043
        %v1064 = vsub.f32 %v1060, %v1044
        %v1065 = vsub.f32 %v1061, %v1045
        %v1066 = vmul.f32 %v210, 5.0
        %v1067 = vmul.f32 %v211, 5.0
        %v1068 = vmul.f32 %v212, 5.0
        %v1069 = vmul.f32 %v213, 5.0
        %v1070 = vmul.f32 %v1066, %v1062
        %v1071 = vmul.f32 %v1067, %v1063
        %v1072 = vmul.f32 %v1068, %v1064
        %v1073 = vmul.f32 %v1069, %v1065
        %v1074 = vsub.f32 %v1070, %v1050
        %v1075 = vsub.f32 %v1071, %v1051
        %v1076 = vsub.f32 %v1072, %v1052
        %v1077 = vsub.f32 %v1073, %v1053
        %v1078 = vand.u32 2147483647, %v148
        %vm1079 = vcmp.le.f32.partialorder %v1078, 0.7853982
        %vm1080 = vcmp.lt.s32.totalorder %v148, 0
        %v1081 = vand.u32 %v148, 2139095040
        %v1082 = vshrl.u32 %v1081, 23
        %v1083 = vsub.s32 %v1082, 127
        %v1084 = vand.u32 2147483647, %v148
        %v1085 = vand.u32 %v1084, 8388607
        %v1086 = vor.u32 %v1085, 8388608
        %v1087 = vsub.s32 0, %v1086
        %v1088 = vadd.s32 %v1083, 1
        %vm1089 = vcmp.gt.s32.totalorder %v1088, 0
        %v1090 = vsel %vm1089, %v1088, 0
        %v1091 = vshrl.u32 %v1090, 5
        %v1092 = vand.u32 %v1090, 31
        %v1093 = vsub.s32 32, %v1092
        %v1094 = vshrl.u32 683565275, %v1093
        %v1095 = vshll.u32 683565275, %v1092
        %v1096 = vshrl.u32 2475754826, %v1093
        %v1097 = vor.u32 %v1095, %v1096
        %v1098 = vshll.u32 2475754826, %v1092
        %v1099 = vshrl.u32 2131351028, %v1093
        %v1100 = vor.u32 %v1098, %v1099
        %v1101 = vshll.u32 2131351028, %v1092
        %v1102 = vshrl.u32 2102212464, %v1093
        %v1103 = vor.u32 %v1101, %v1102
        %v1104 = vshll.u32 2102212464, %v1092
        %v1105 = vshrl.u32 920167782, %v1093
        %v1106 = vor.u32 %v1104, %v1105
        %v1107 = vshll.u32 920167782, %v1092
        %v1108 = vshrl.u32 1326507024, %v1093
        %v1109 = vor.u32 %v1107, %v1108
        %vm1110 = vcmp.lt.s32.totalorder %v1091, 1
        %vm1111 = vcmp.lt.s32.totalorder %v1091, 2
        %vm1112 = vcmp.lt.s32.totalorder %v1091, 3
        %vm1113 = vcmp.lt.s32.totalorder %v1091, 4
        %v1114 = vsel %vm1110, %v1094, %v1097
        %v1115 = vsel %vm1113, %v1103, 2102212464
        %v1116 = vsel %vm1112, %v1100, %v1115
        %v1117 = vsel %vm1111, %v1114, %v1116
        %v1118 = vsel %vm1110, %v1097, %v1100
        %v1119 = vsel %vm1113, %v1106, 920167782
        %v1120 = vsel %vm1112, %v1103, %v1119
        %v1121 = vsel %vm1111, %v1118, %v1120
        %v1122 = vsel %vm1110, %v1100, %v1103
        %v1123 = vsel %vm1113, %v1109, 1326507024
        %v1124 = vsel %vm1112, %v1106, %v1123
        %v1125 = vsel %vm1111, %v1122, %v1124
        %v1126 = vshll.u32 %v1086, 8
        %v1127 = vmul.u32.u64.compose %v1126, %v1125
        %v1128 = vextract.low.u32 %v1127
        %v1129 = vextract.high.u32 %v1127
        %v1130 = vmul.u32.u64.compose %v1126, %v1121
        %v1131 = vextract.low.u32 %v1130
        %v1132 = vextract.high.u32 %v1130
        %v1133 = vmul.u32 %v1126, %v1117
        %v1134 = vadd.s32 %v1129, %v1131
        %vm1135 = vc.u32 %v1129, %v1131
        %v1136 = vadd.s32 %v1132, 1
        %v1137 = vsel %vm1135, %v1136, %v1132
        %v1138 = vadd.s32 %v1133, %v1137
        %v1139 = vadd.s32 %v1138, 536870912
        %v1140 = vshrl.u32 %v1139, 30
        %v1141 = vshll.u32 %v1140, 30
        %v1142 = vsub.s32 %v1138, %v1141
        %vm1143 = vcmp.lt.s32.totalorder %v1142, 0
        %v1144 = vsub.s32 0, %v1142
        %v1145 = vsel %vm1143, %v1144, %v1142
        %v1146 = vclz %v1145
        %v1147 = vsub.s32 %v1146, 2
        %vm1148 = vcmp.gt.s32.totalorder 0, %v1147
        %v1149 = vsel %vm1148, 0, %v1147
        %v1150 = vsub.s32 32, %v1149
        %v1151 = vshll.u32 %v1142, %v1149
        %v1152 = vshrl.u32 %v1134, %v1150
        %v1153 = vor.u32 %v1151, %v1152
        %v1154 = vsub.s32 4294967266, %v1149
        %v1155 = vadd.s32 %v1154, 127
        %v1156 = vshll.u32 %v1155, 23
        %v1157 = vor.u32 4788187, %v1156
        %v1158 = vand.u32 2147483647, %v1157
        %v1160 = vcvt.s32.f32 %v1153
        %v1161 = vmul.f32 %v1160, %v1158
        %v1162 = vxor.u32 %v1161, 2147483648
        %v1163 = vsel %vm1080, %v1162, %v1161
        %v1164 = vsub.s32 4, %v1140
        %v1165 = vsel %vm1080, %v1164, %v1140
        %v1166 = vsel %vm1079, %v148, %v1163
        %v1167 = vsel %vm1079, 0, %v1165
        %v1168 = vcosq.f32.pop %v1166
        %v1169 = vsinq.f32.pop %v1166
        %vm1170 = vweird.f32 %v148
        %v1171 = vand.u32 %v1167, 3
        %vm1172 = vcmp.lt.s32.totalorder %v1171, 2
        %vm1173 = vcmp.eq.s32.totalorder %v1171, 0
        %v1174 = vxor.u32 %v1169, 2147483648
        %v1175 = vsel %vm1173, %v1168, %v1174
        %vm1176 = vcmp.eq.s32.totalorder %v1171, 2
        %v1177 = vxor.u32 %v1168, 2147483648
        %v1178 = vsel %vm1176, %v1177, %v1169
        %v1179 = vsel %vm1172, %v1175, %v1178
        %v1180 = vsel %vm1170, nan, %v1179
        %v1181 = vmul.f32 %v1180, 3.0
        %v1182 = vmul.f32 %v1181, %v1180
        %v1183 = vsub.f32 %v1182, 1.0
        %v1184 = vmul.f32 %v1183, 0.5
        %v1185 = vmul.f32 %v1180, 5.0
        %v1186 = vmul.f32 %v1185, %v1184
        %v1187 = vmul.f32 %v1180, 2.0
        %v1188 = vsub.f32 %v1186, %v1187
        %v1189 = vmul.f32 %v1188, 0.33333334
        %1190 = vset.pattern.permute.xlu0 2
        %1191 = vperm.xlu0 %1190, %v164
        %v1192 = vpop.permute.xlu0 %1191
        %1194 = vset.pattern.permute.xlu0 2
        %1195 = vperm.xlu0 %1194, %v165
        %v1196 = vpop.permute.xlu0 %1195
        %v1198 = vmul.f32 %v1042, %v1192
        %v1199 = vmul.f32 %v1043, %v1192
        %v1200 = vmul.f32 %v1044, %v1196
        %v1201 = vmul.f32 %v1045, %v1196
        %1202 = vset.pattern.permute.xlu0 3
        %1203 = vperm.xlu0 %1202, %v164
        %v1204 = vpop.permute.xlu0 %1203
        %1206 = vset.pattern.permute.xlu0 3
        %1207 = vperm.xlu0 %1206, %v165
        %v1208 = vpop.permute.xlu0 %1207
        %v1211 = vlaneseq
        %v1212 = vshrl.u32 %v1211, 7
        %v1213 = vsub.s32 0, %v1212
        %v1214 = vrot.slane %v1180, %v1213
        %v1215 = vlaneseq
        %v1216 = vshrl.u32 %v1215, 7
        %v1217 = vsub.s32 1, %v1216
        %v1218 = vrot.slane %v1180, %v1217
        %v1221 = vmul.f32 %v1204, %v1214
        %v1222 = vmul.f32 %v1204, %v1218
        %v1223 = vmul.f32 %v1208, %v1214
        %v1224 = vmul.f32 %v1208, %v1218
        %v1225 = vmul.f32 %v1050, %v1221
        %v1226 = vmul.f32 %v1051, %v1222
        %v1227 = vmul.f32 %v1052, %v1223
        %v1228 = vmul.f32 %v1053, %v1224
        %v1229 = vadd.f32 %v1198, %v1225
        %v1230 = vadd.f32 %v1199, %v1226
        %v1231 = vadd.f32 %v1200, %v1227
        %v1232 = vadd.f32 %v1201, %v1228
        %1233 = vset.pattern.permute.xlu0 4
        %1234 = vperm.xlu0 %1233, %v164
        %v1235 = vpop.permute.xlu0 %1234
        %1237 = vset.pattern.permute.xlu0 4
        %1238 = vperm.xlu0 %1237, %v165
        %v1239 = vpop.permute.xlu0 %1238
        %v1242 = vlaneseq
        %v1243 = vshrl.u32 %v1242, 7
        %v1244 = vsub.s32 0, %v1243
        %v1245 = vrot.slane %v1184, %v1244
        %v1246 = vlaneseq
        %v1247 = vshrl.u32 %v1246, 7
        %v1248 = vsub.s32 1, %v1247
        %v1249 = vrot.slane %v1184, %v1248
        %v1252 = vmul.f32 %v1235, %v1245
        %v1253 = vmul.f32 %v1235, %v1249
        %v1254 = vmul.f32 %v1239, %v1245
        %v1255 = vmul.f32 %v1239, %v1249
        %v1256 = vmul.f32 %v1062, %v1252
        %v1257 = vmul.f32 %v1063, %v1253
        %v1258 = vmul.f32 %v1064, %v1254
        %v1259 = vmul.f32 %v1065, %v1255
        %v1260 = vadd.f32 %v1229, %v1256
        %v1261 = vadd.f32 %v1230, %v1257
        %v1262 = vadd.f32 %v1231, %v1258
        %v1263 = vadd.f32 %v1232, %v1259
        %1264 = vset.pattern.permute.xlu0 5
        %1265 = vperm.xlu0 %1264, %v164
        %v1266 = vpop.permute.xlu0 %1265
        %1268 = vset.pattern.permute.xlu0 5
        %1269 = vperm.xlu0 %1268, %v165
        %v1270 = vpop.permute.xlu0 %1269
        %v1273 = vlaneseq
        %v1274 = vshrl.u32 %v1273, 7
        %v1275 = vsub.s32 0, %v1274
        %v1276 = vrot.slane %v1189, %v1275
        %v1277 = vlaneseq
        %v1278 = vshrl.u32 %v1277, 7
        %v1279 = vsub.s32 1, %v1278
        %v1280 = vrot.slane %v1189, %v1279
        %v1283 = vmul.f32 %v1266, %v1276
        %v1284 = vmul.f32 %v1266, %v1280
        %v1285 = vmul.f32 %v1270, %v1276
        %v1286 = vmul.f32 %v1270, %v1280
        %v1287 = vmul.f32 %v1074, %v1283
        %v1288 = vmul.f32 %v1075, %v1284
        %v1289 = vmul.f32 %v1076, %v1285
        %v1290 = vmul.f32 %v1077, %v1286
        %v1291 = vadd.f32 %v1260, %v1287
        %v1292 = vadd.f32 %v1261, %v1288
        %v1293 = vadd.f32 %v1262, %v1289
        %v1294 = vadd.f32 %v1263, %v1290
        %v1296 = vlaneseq
        %v1297 = vshrl.u32 %v1296, 7
        %v1298 = vsub.s32 0, %v1297
        %v1299 = vrot.slane %v163, %v1298
        %v1300 = vlaneseq
        %v1301 = vshrl.u32 %v1300, 7
        %v1302 = vsub.s32 1, %v1301
        %v1303 = vrot.slane %v163, %v1302
        %v1306 = vmul.f32 %v1299, %v1291
        %v1307 = vmul.f32 %v1303, %v1292
        %v1308 = vmul.f32 %v1299, %v1293
        %v1309 = vmul.f32 %v1303, %v1294
        %1310 = vst [vmem:[%s137] sm:$0xff] %v1306
        %1311 = vst [vmem:[%s137 + $0x8] sm:$0xff] %v1307
        %1312 = vst [vmem:[%s137 + $0x10] sm:$0xff] %v1308
        %1313 = vst [vmem:[%s137 + $0x18] sm:$0xff] %v1309
        %s1314 = sand.u32 %s71, 1
        %s1315 = scalar_lea.sflag [#allocation3], %s1314
        %s1316 = sand.u32 %s71, 1
        %s1317 = smul.addr %s1316, 32
        %s1318 = scalar_lea.vmem [#allocation2], %s1317
        // Predicated region
        $region29: #{tpu_custom_call.1} parent=27 // pred_check
          %p1319 = pneg %p81
        $region30: #{tpu_custom_call.1} parent=27 // pred_check_branch
          %1321 = sbr.rel (%p1319) target = $region32
        $region31: #{tpu_custom_call.1} parent=27 // pred_region
          %s1322 = smul.u32 2, %s16
          %s1324 = ssub.s32 512, 512
          %1325 = vsyncadd %s1315, %s1324
          %s1326 = smul.addr %s1322, 128
          %s1327 = scalar_lea.hbm %s2, %s1326
          %s1328 = sshll.u32 %s1318, 4
          %s1329 = int_to_ptr.vmem [resolvable:$true] %s1328
          %1334 = dma.vmem_to_hbm [thread:$0]  %s1329, 512, %s1327, %s1315, 256, 512, 16
        $region32: #{tpu_custom_call.1} parent=27 // pred_fallthru
          _
      $region28: #{tpu_custom_call.1} parent=5 // pred_fallthru
        _
      %p1335 = scmp.le.s32.totalorder 2, %s11
      // Predicated region
      $region33: #{tpu_custom_call.1} parent=5 // pred_check
        %p1336 = pneg %p1335
      $region34: #{tpu_custom_call.1} parent=5 // pred_check_branch
        %1338 = sbr.rel (%p1336) target = $region36
      $region35: #{tpu_custom_call.1} parent=5 // pred_region
        %s1339 = ssub.s32 %s11, 2
        // Predicated region
        $region37: #{tpu_custom_call.1} parent=35 // pred_check
          %p1340 = pneg %p87
        $region38: #{tpu_custom_call.1} parent=35 // pred_check_branch
          %1342 = sbr.rel (%p1340) target = $region40
        $region39: #{tpu_custom_call.1} parent=35 // pred_region
          %s1343 = sand.u32 %s72, 1
          %s1344 = scalar_lea.sflag [#allocation3], %s1343
          %s1345 = sand.u32 %s72, 1
          %s1346 = smul.addr %s1345, 32
          %s1347 = scalar_lea.vmem [#allocation2], %s1346
          %1348 = dma.done %s1344, 512
        $region40: #{tpu_custom_call.1} parent=35 // pred_fallthru
          _
      $region36: #{tpu_custom_call.1} parent=5 // pred_fallthru
        _
    $region6: #{tpu_custom_call.1} parent=1 // loop_footer
      %s15 = sadd.s32 1, %s11
    $region7: #{tpu_custom_call.1} parent=1 // loop_footer_branch
      %10 = sbr.rel target = $region3
    $region8: #{tpu_custom_call.1} parent=1 // loop_exit
      _
    %1349 = vsyncpa [#allocation3], 1
    %s1350 = scalar_lea.sflag [#allocation3], 1
    %1351 = vsyncpa %s1350, 1

</llo_original>
